<compile_context>
chip_gen: v6e
topology: v6e:2x2x1
jax: 0.10.0
libtpu: 0.0.40
codegen_flags: <defaults>
</compile_context>

<pallas_src>
import numpy as np
import jax
import jax.numpy as jnp
from jax.experimental import pallas as pl
from jax.experimental.pallas import tpu as pltpu

N_QUBITS = 4            # n_reduced_features
DIM = 1 << N_QUBITS     # 16-dim statevector (real throughout: only H/RY/CNOT)
CIRCUIT_DEPTH = 1
IMAGE_FEATURES = 512
N_CLASSES = 2


# ---------------------------------------------------------------------------
# Host-side constant circuit structure.
# ---------------------------------------------------------------------------
def _cnot(c, ctrl, tgt):
    return c ^ (((c >> ctrl) & 1) << tgt)


def _raw_circuit_constants():
    """Un-precomposed gate structure (numpy). Used by the reference simulator
    and to precompose the variational block."""
    # P[q]: (psi @ P[q])[b] == psi[b ^ (1<<q)]   (partner amplitude for RY on q)
    P = np.zeros((N_QUBITS, DIM, DIM), np.float32)
    # signs[q][b]: -1 if bit_q(b)==0 else +1   (RY sign of the partner term)
    signs = np.zeros((N_QUBITS, DIM), np.float32)
    for q in range(N_QUBITS):
        mask = 1 << q
        for b in range(DIM):
            P[q, b ^ mask, b] = 1.0
            signs[q, b] = 1.0 if (b >> q) & 1 else -1.0

    # Entangling layer = CNOT(0,1), CNOT(2,3), CNOT(1,2)  (qiskit little-endian);
    # applied as psi @ Pent (row-vector convention -> inverse map per column).
    Pent = np.zeros((DIM, DIM), np.float32)
    for c in range(DIM):
        h = _cnot(_cnot(_cnot(c, 1, 2), 2, 3), 0, 1)
        Pent[h, c] = 1.0

    # Observable i = Z on qubit (n-1-i)   (qiskit Pauli-string label ordering)
    Zm = np.zeros((DIM, N_QUBITS), np.float32)
    for b in range(DIM):
        for i in range(N_QUBITS):
            qubit = N_QUBITS - 1 - i
            Zm[b, i] = 1.0 - 2.0 * ((b >> qubit) & 1)

    return P, signs, Pent, Zm


_P_NP, _SIGNS_NP, _PENT_NP, _ZM_NP = _raw_circuit_constants()
# S[q] = P[q] with the RY sign folded in: (psi @ S[q])[b] = sgn_q(b) * psi[b^mask]
_S_NP = _P_NP * _SIGNS_NP[:, None, :]
# bitsign[q, b] = +1 if bit q of b is set else -1
_BITSIGN_NP = _SIGNS_NP


def precompose_params(theta, w2_t):
    """Fold the batch-independent circuit pieces into two tiny matrices (plain
    jnp on the host / outside the kernel, so it stays differentiable in theta):
      U (16,16): entangler + depth*4 RY(theta) gates, acting as psi' = psi @ U
      M (16, 2): 0.0625 * Zm @ W2^T   (0.0625 = (1/4)^2 absorbs the H^4 norm
                 applied to probabilities)
    """
    theta = jnp.reshape(theta, (-1,))
    I = jnp.eye(DIM, dtype=jnp.float32)
    Pent = jnp.asarray(_PENT_NP)
    S = jnp.asarray(_S_NP)
    U = I
    for layer in range(CIRCUIT_DEPTH):
        U = U @ Pent
        for q in range(N_QUBITS):
            half = theta[layer * N_QUBITS + q] * 0.5
            G = jnp.cos(half) * I + jnp.sin(half) * S[q]   # RY(theta_q) on qubit q
            U = U @ G
    M = 0.0625 * (jnp.asarray(_ZM_NP) @ w2_t)              # (16, 2)
    return U.astype(jnp.float32), M.astype(jnp.float32)


# ---------------------------------------------------------------------------
# Pallas kernel: whole hybrid forward for one batch tile.
# ---------------------------------------------------------------------------
def quantum_model_kernel(x_ref, w1_ref, b1_ref, bsgn_ref, u_ref, m_ref, b2_ref,
                         out_ref):
    # Linear(512 -> 4) on the MXU; f32 accumulation even when x/W1 are bf16.
    feat = (jnp.dot(x_ref[...], w1_ref[...], preferred_element_type=jnp.float32)
            + b1_ref[...])                                   # (TB, 4) f32
    # QuantumLayer input scaling tanh(x)*pi/2, then RY half-angles.
    half = jnp.tanh(feat) * np.float32(np.pi / 4.0)          # |half| <= pi/4
    # cos/sin as short even/odd polynomials on the VPU (4 terms, <4e-6 abs
    # error over |half| <= pi/4); keeps the single EUP slot for tanh only.
    h2 = half * half
    c = 1.0 + h2 * (-0.5 + h2 * (1.0 / 24.0 - h2 * (1.0 / 720.0)))
    s = half * (1.0 + h2 * (-1.0 / 6.0 + h2 * (1.0 / 120.0 - h2 * (1.0 / 5040.0))))

    # Closed-form product state after H^4 + per-qubit data-encoding RY:
    #   psi[b] ∝ Π_q (c_q + sgn_q(b) * s_q)   (the (1/4)^2 norm is folded into M)
    psi = c[:, 0:1] + bsgn_ref[0:1, :] * s[:, 0:1]           # (TB, 16)
    for q in range(1, N_QUBITS):
        psi = psi * (c[:, q:q + 1] + bsgn_ref[q:q + 1, :] * s[:, q:q + 1])

    # Precomposed variational block (CNOT entangler + RY(theta) layers).
    phi = jnp.dot(psi, u_ref[...], preferred_element_type=jnp.float32)
    probs = phi * phi                                        # real state -> probs
    # Precomposed <Z_i> readout + Linear(4 -> 2) head.
    out_ref[...] = (jnp.dot(probs, m_ref[...], preferred_element_type=jnp.float32)
                    + b2_ref[...])


# ---------------------------------------------------------------------------
# Tiling helpers + wrapper
# ---------------------------------------------------------------------------
def _round_up(v, m):
    return -(-v // m) * m


def _pick_batch_tile(B, tb_req, granule):
    """Batch tile + padded batch.  Big tiles (default 2048) keep the kernel on
    the HBM roofline; the >=2-step rule keeps both v7x TensorCores busy."""
    b_pad = _round_up(max(int(B), 1), granule)
    tb = max(granule, (min(int(tb_req), b_pad) // granule) * granule)
    steps = _round_up(b_pad, tb) // tb
    if steps < 2 and b_pad >= 256:
        # v7x has 2 TCs: guarantee >= 2 "parallel" grid steps for megacore
        # sharding; a slightly smaller tile is harmless on 1-TC v5e/v6e.
        tb = min(tb, _round_up(_round_up(b_pad, 2) // 2, granule))
    Bp = _round_up(b_pad, tb)
    return tb, Bp


def quantum_model_forward(x, w1_t, b1, theta, w2_t, b2, *, tb=2048,
                          x_dtype=None):
    """Hybrid forward.  Pass x_dtype=jnp.bfloat16 to halve the HBM traffic of
    the dominant x read (~2x end-to-end; ~1e-3 relative drift — owner choice)."""
    B = x.shape[0]
    if x_dtype is None:
        x_dtype = x.dtype
    itemsize = jnp.dtype(x_dtype).itemsize
    granule = max(8, 32 // itemsize)          # sublane granule: 8 f32 / 16 bf16

    tb, Bp = _pick_batch_tile(B, tb, granule)
    steps = Bp // tb

    x = x.astype(x_dtype)
    w1c = w1_t.astype(x_dtype)                # MXU runs in x_dtype, accumulates f32
    if Bp != B:
        x = jnp.pad(x, ((0, Bp - B), (0, 0)))

    U, M = precompose_params(theta, w2_t)
    bitsign = jnp.asarray(_BITSIGN_NP)        # (4, 16)

    def const_spec(shape):
        # Constant-index blocks are DMA'd once (block index never changes).
        return pl.BlockSpec(shape, lambda i, _n=len(shape): (0,) * _n)

    x_spec_kwargs = {}
    if steps >= 3:
        # Per-step compute is short relative to the x DMA: a 3rd buffer hides
        # DMA issue/completion jitter and keeps the HBM stream continuous.
        x_spec_kwargs["pipeline_mode"] = pl.Buffered(3)

    flops = Bp * (2 * IMAGE_FEATURES * N_QUBITS        # Linear(512->4)
                  + 2 * DIM * DIM                      # psi @ U
                  + 2 * DIM * N_CLASSES                # probs @ M
                  + 200)                               # trig polys + product state
    cost = pl.CostEstimate(
        flops=int(flops),
        transcendentals=int(Bp * N_QUBITS),            # tanh only (sin/cos are polys)
        bytes_accessed=int(Bp * IMAGE_FEATURES * itemsize
                           + Bp * N_CLASSES * 4
                           + (IMAGE_FEATURES * N_QUBITS + DIM * DIM) * 4 + 4096))

    out = pl.pallas_call(
        quantum_model_kernel,
        out_shape=jax.ShapeDtypeStruct((Bp, N_CLASSES), jnp.float32),
        grid_spec=pltpu.PrefetchScalarGridSpec(
            num_scalar_prefetch=0,
            grid=(steps,),
            in_specs=[
                pl.BlockSpec((tb, IMAGE_FEATURES), lambda i: (i, 0),
                             **x_spec_kwargs),                 # x (streamed)
                const_spec((IMAGE_FEATURES, N_QUBITS)),        # W1^T
                const_spec((1, N_QUBITS)),                     # b1
                const_spec((N_QUBITS, DIM)),                   # bit signs
                const_spec((DIM, DIM)),                        # U
                const_spec((DIM, N_CLASSES)),                  # M
                const_spec((1, N_CLASSES)),                    # b2
            ],
            out_specs=pl.BlockSpec((tb, N_CLASSES), lambda i: (i, 0)),
        ),
        compiler_params=pltpu.CompilerParams(
            dimension_semantics=("parallel",),
            vmem_limit_bytes=48 * 1024 * 1024),
        cost_estimate=cost,
    )(x, w1c, b1, bitsign, U, M, b2)
    return out[:B]


# ---------------------------------------------------------------------------
# Pure-JAX reference: full un-precomposed statevector simulation (also checks
# the host-side precomposition, not just the kernel).
# ---------------------------------------------------------------------------
def reference_forward(x, w1_t, b1, theta, w2_t, b2):
    P = jnp.asarray(_P_NP)
    signs = jnp.asarray(_SIGNS_NP)
    Pent = jnp.asarray(_PENT_NP)
    Zm = jnp.asarray(_ZM_NP)
    feat = x @ w1_t + b1
    ang = jnp.tanh(feat) * (np.pi / 2.0)
    psi = jnp.full((x.shape[0], DIM), 0.25, jnp.float32)     # |0000> then H^4
    for q in range(N_QUBITS):
        half = ang[:, q:q + 1] * 0.5
        psi = jnp.cos(half) * psi + signs[q:q + 1] * (jnp.sin(half) * (psi @ P[q]))
    th = jnp.reshape(theta, (-1,))
    for layer in range(CIRCUIT_DEPTH):
        psi = psi @ Pent
        for q in range(N_QUBITS):
            half = th[layer * N_QUBITS + q] * 0.5
            psi = jnp.cos(half) * psi + signs[q:q + 1] * (jnp.sin(half) * (psi @ P[q]))
    zexp = (psi * psi) @ Zm
    return zexp @ w2_t + b2


if __name__ == "__main__":
    B = 8
    key = jax.random.PRNGKey(0)
    kx, kw1, kb1, kth, kw2, kb2 = jax.random.split(key, 6)

    # Deterministic synthetic parameters (shapes follow the nn.Module __init__).
    s1 = 1.0 / np.sqrt(IMAGE_FEATURES)
    w1 = jax.random.uniform(kw1, (N_QUBITS, IMAGE_FEATURES), jnp.float32, -s1, s1)
    b1 = jax.random.uniform(kb1, (1, N_QUBITS), jnp.float32, -s1, s1)
    theta = jax.random.uniform(kth, (1, CIRCUIT_DEPTH * N_QUBITS), jnp.float32, -1.0, 1.0)
    s2 = 1.0 / np.sqrt(N_QUBITS)
    w2 = jax.random.uniform(kw2, (N_CLASSES, N_QUBITS), jnp.float32, -s2, s2)
    b2 = jax.random.uniform(kb2, (1, N_CLASSES), jnp.float32, -s2, s2)

    x = jax.random.normal(kx, (B, IMAGE_FEATURES), jnp.float32)
    w1_t = w1.T  # (512, 4)
    w2_t = w2.T  # (4, 2)

    # 1) small batch, f32 path (single grid step).
    out = jax.block_until_ready(quantum_model_forward(x, w1_t, b1, theta, w2_t, b2))
    ref = jax.block_until_ready(reference_forward(x, w1_t, b1, theta, w2_t, b2))
    assert out.shape == (B, N_CLASSES)
    if not np.allclose(np.asarray(out), np.asarray(ref), rtol=2e-3, atol=2e-3):
        raise AssertionError("Pallas kernel disagrees with JAX reference (f32, B=8)")

    # 2) larger batch: exercises the multi-step "parallel" grid (v7x megacore
    #    path) plus batch padding/slicing.
    B2 = 600
    x2 = jax.random.normal(jax.random.PRNGKey(1), (B2, IMAGE_FEATURES), jnp.float32)
    out2 = jax.block_until_ready(quantum_model_forward(x2, w1_t, b1, theta, w2_t, b2))
    ref2 = jax.block_until_ready(reference_forward(x2, w1_t, b1, theta, w2_t, b2))
    assert out2.shape == (B2, N_CLASSES)
    if not np.allclose(np.asarray(out2), np.asarray(ref2), rtol=1e-2, atol=1e-2):
        raise AssertionError("Pallas kernel disagrees with JAX reference (f32, B=600)")

    # 3) optional bf16-x path (halves the HBM traffic of the dominant x read;
    #    small, documented numerics drift -> loose tolerance).
    out_bf16 = jax.block_until_ready(
        quantum_model_forward(x, w1_t, b1, theta, w2_t, b2, x_dtype=jnp.bfloat16))
    if not np.allclose(np.asarray(out_bf16), np.asarray(ref), rtol=5e-2, atol=5e-2):
        raise AssertionError("Pallas kernel (bf16 x) disagrees with JAX reference")

    # TODO(synk): the 'mnist' branch uses a pretrained torchvision ResNet-18
    # feature extractor (checkpoint load) and is intentionally not reproduced here.
    print("KERNEL_OK")
</pallas_src>

<mosaic_0001>
module attributes {stable_mosaic.version = 11 : i64} {
  func.func @quantum_model_kernel(%arg0: i32, %arg1: memref<8x512xf32, #tpu.memory_space<vmem>>, %arg2: memref<512x4xf32, #tpu.memory_space<vmem>>, %arg3: memref<1x4xf32, #tpu.memory_space<vmem>>, %arg4: memref<4x16xf32, #tpu.memory_space<vmem>>, %arg5: memref<16x16xf32, #tpu.memory_space<vmem>>, %arg6: memref<16x2xf32, #tpu.memory_space<vmem>>, %arg7: memref<1x2xf32, #tpu.memory_space<vmem>>, %arg8: memref<8x2xf32, #tpu.memory_space<vmem>>) attributes {dimension_semantics = [#tpu.dimension_semantics<parallel>], iteration_bounds = array<i64: 1>, scalar_prefetch = 0 : i64, scratch_operands = 0 : i64, tpu.core_type = #tpu.core_type<tc>, window_params = [{transform_indices = @transform_0, window_bounds = array<i64: 8, 512>}, {pipeline_mode = #tpu.pipeline_mode<synchronous>, transform_indices = @transform_1, window_bounds = array<i64: 512, 4>}, {pipeline_mode = #tpu.pipeline_mode<synchronous>, transform_indices = @transform_2, window_bounds = array<i64: 1, 4>}, {pipeline_mode = #tpu.pipeline_mode<synchronous>, transform_indices = @transform_3, window_bounds = array<i64: 4, 16>}, {pipeline_mode = #tpu.pipeline_mode<synchronous>, transform_indices = @transform_4, window_bounds = array<i64: 16, 16>}, {pipeline_mode = #tpu.pipeline_mode<synchronous>, transform_indices = @transform_5, window_bounds = array<i64: 16, 2>}, {pipeline_mode = #tpu.pipeline_mode<synchronous>, transform_indices = @transform_6, window_bounds = array<i64: 1, 2>}, {transform_indices = @transform_7, window_bounds = array<i64: 8, 2>}]} {
    %c0 = arith.constant 0 : index
    %c0_0 = arith.constant 0 : index
    %0 = vector.load %arg1[%c0, %c0_0] : memref<8x512xf32, #tpu.memory_space<vmem>>, vector<8x512xf32>
    %c0_1 = arith.constant 0 : index
    %c0_2 = arith.constant 0 : index
    %1 = vector.load %arg2[%c0_1, %c0_2] : memref<512x4xf32, #tpu.memory_space<vmem>>, vector<512x4xf32>
    %cst = arith.constant dense<0.000000e+00> : vector<8x4xf32>
    %2 = tpu.matmul %0, %1, %cst {dimension_numbers = #tpu.dot_dimension_numbers<[1], [0], [0], [1], [0, 0, 1, 1], [], []>} : vector<8x512xf32>, vector<512x4xf32>, vector<8x4xf32> -> vector<8x4xf32>
    %c0_3 = arith.constant 0 : index
    %c0_4 = arith.constant 0 : index
    %3 = vector.load %arg3[%c0_3, %c0_4] : memref<1x4xf32, #tpu.memory_space<vmem>>, vector<1x4xf32>
    %4 = vector.broadcast %3 : vector<1x4xf32> to vector<8x4xf32>
    %5 = arith.addf %2, %4 : vector<8x4xf32>
    %6 = math.tanh %5 : vector<8x4xf32>
    %cst_5 = arith.constant 0.785398185 : f32
    %7 = vector.broadcast %cst_5 : f32 to vector<8x4xf32>
    %8 = arith.mulf %6, %7 : vector<8x4xf32>
    %9 = arith.mulf %8, %8 : vector<8x4xf32>
    %cst_6 = arith.constant 0.00138888892 : f32
    %10 = vector.broadcast %cst_6 : f32 to vector<8x4xf32>
    %11 = arith.mulf %9, %10 : vector<8x4xf32>
    %cst_7 = arith.constant 0.0416666679 : f32
    %12 = vector.broadcast %cst_7 : f32 to vector<8x4xf32>
    %13 = arith.subf %12, %11 : vector<8x4xf32>
    %14 = arith.mulf %9, %13 : vector<8x4xf32>
    %cst_8 = arith.constant -5.000000e-01 : f32
    %15 = vector.broadcast %cst_8 : f32 to vector<8x4xf32>
    %16 = arith.addf %15, %14 : vector<8x4xf32>
    %17 = arith.mulf %9, %16 : vector<8x4xf32>
    %cst_9 = arith.constant 1.000000e+00 : f32
    %18 = vector.broadcast %cst_9 : f32 to vector<8x4xf32>
    %19 = arith.addf %18, %17 : vector<8x4xf32>
    %cst_10 = arith.constant 1.98412701E-4 : f32
    %20 = vector.broadcast %cst_10 : f32 to vector<8x4xf32>
    %21 = arith.mulf %9, %20 : vector<8x4xf32>
    %cst_11 = arith.constant 0.00833333377 : f32
    %22 = vector.broadcast %cst_11 : f32 to vector<8x4xf32>
    %23 = arith.subf %22, %21 : vector<8x4xf32>
    %24 = arith.mulf %9, %23 : vector<8x4xf32>
    %cst_12 = arith.constant -0.166666672 : f32
    %25 = vector.broadcast %cst_12 : f32 to vector<8x4xf32>
    %26 = arith.addf %25, %24 : vector<8x4xf32>
    %27 = arith.mulf %9, %26 : vector<8x4xf32>
    %cst_13 = arith.constant 1.000000e+00 : f32
    %28 = vector.broadcast %cst_13 : f32 to vector<8x4xf32>
    %29 = arith.addf %28, %27 : vector<8x4xf32>
    %30 = arith.mulf %8, %29 : vector<8x4xf32>
    %31 = vector.extract_strided_slice %19 {offsets = [0, 0], sizes = [8, 1], strides = [1, 1]} : vector<8x4xf32> to vector<8x1xf32>
    %c0_14 = arith.constant 0 : index
    %c0_15 = arith.constant 0 : index
    %32 = vector.load %arg4[%c0_14, %c0_15] : memref<4x16xf32, #tpu.memory_space<vmem>>, vector<1x16xf32>
    %33 = vector.extract_strided_slice %30 {offsets = [0, 0], sizes = [8, 1], strides = [1, 1]} : vector<8x4xf32> to vector<8x1xf32>
    %34 = vector.broadcast %32 : vector<1x16xf32> to vector<8x16xf32>
    %35 = vector.broadcast %33 : vector<8x1xf32> to vector<8x16xf32>
    %36 = arith.mulf %34, %35 : vector<8x16xf32>
    %37 = vector.broadcast %31 : vector<8x1xf32> to vector<8x16xf32>
    %38 = arith.addf %37, %36 : vector<8x16xf32>
    %39 = vector.extract_strided_slice %19 {offsets = [0, 1], sizes = [8, 1], strides = [1, 1]} : vector<8x4xf32> to vector<8x1xf32>
    %c1 = arith.constant 1 : index
    %c0_16 = arith.constant 0 : index
    %40 = vector.load %arg4[%c1, %c0_16] : memref<4x16xf32, #tpu.memory_space<vmem>>, vector<1x16xf32>
    %41 = vector.extract_strided_slice %30 {offsets = [0, 1], sizes = [8, 1], strides = [1, 1]} : vector<8x4xf32> to vector<8x1xf32>
    %42 = vector.broadcast %40 : vector<1x16xf32> to vector<8x16xf32>
    %43 = vector.broadcast %41 : vector<8x1xf32> to vector<8x16xf32>
    %44 = arith.mulf %42, %43 : vector<8x16xf32>
    %45 = vector.broadcast %39 : vector<8x1xf32> to vector<8x16xf32>
    %46 = arith.addf %45, %44 : vector<8x16xf32>
    %47 = arith.mulf %38, %46 : vector<8x16xf32>
    %48 = vector.extract_strided_slice %19 {offsets = [0, 2], sizes = [8, 1], strides = [1, 1]} : vector<8x4xf32> to vector<8x1xf32>
    %c2 = arith.constant 2 : index
    %c0_17 = arith.constant 0 : index
    %49 = vector.load %arg4[%c2, %c0_17] : memref<4x16xf32, #tpu.memory_space<vmem>>, vector<1x16xf32>
    %50 = vector.extract_strided_slice %30 {offsets = [0, 2], sizes = [8, 1], strides = [1, 1]} : vector<8x4xf32> to vector<8x1xf32>
    %51 = vector.broadcast %49 : vector<1x16xf32> to vector<8x16xf32>
    %52 = vector.broadcast %50 : vector<8x1xf32> to vector<8x16xf32>
    %53 = arith.mulf %51, %52 : vector<8x16xf32>
    %54 = vector.broadcast %48 : vector<8x1xf32> to vector<8x16xf32>
    %55 = arith.addf %54, %53 : vector<8x16xf32>
    %56 = arith.mulf %47, %55 : vector<8x16xf32>
    %57 = vector.extract_strided_slice %19 {offsets = [0, 3], sizes = [8, 1], strides = [1, 1]} : vector<8x4xf32> to vector<8x1xf32>
    %c3 = arith.constant 3 : index
    %c0_18 = arith.constant 0 : index
    %58 = vector.load %arg4[%c3, %c0_18] : memref<4x16xf32, #tpu.memory_space<vmem>>, vector<1x16xf32>
    %59 = vector.extract_strided_slice %30 {offsets = [0, 3], sizes = [8, 1], strides = [1, 1]} : vector<8x4xf32> to vector<8x1xf32>
    %60 = vector.broadcast %58 : vector<1x16xf32> to vector<8x16xf32>
    %61 = vector.broadcast %59 : vector<8x1xf32> to vector<8x16xf32>
    %62 = arith.mulf %60, %61 : vector<8x16xf32>
    %63 = vector.broadcast %57 : vector<8x1xf32> to vector<8x16xf32>
    %64 = arith.addf %63, %62 : vector<8x16xf32>
    %65 = arith.mulf %56, %64 : vector<8x16xf32>
    %c0_19 = arith.constant 0 : index
    %c0_20 = arith.constant 0 : index
    %66 = vector.load %arg5[%c0_19, %c0_20] : memref<16x16xf32, #tpu.memory_space<vmem>>, vector<16x16xf32>
    %cst_21 = arith.constant dense<0.000000e+00> : vector<8x16xf32>
    %67 = tpu.matmul %65, %66, %cst_21 {dimension_numbers = #tpu.dot_dimension_numbers<[1], [0], [0], [1], [0, 0, 1, 1], [], []>} : vector<8x16xf32>, vector<16x16xf32>, vector<8x16xf32> -> vector<8x16xf32>
    %68 = arith.mulf %67, %67 : vector<8x16xf32>
    %c0_22 = arith.constant 0 : index
    %c0_23 = arith.constant 0 : index
    %69 = vector.load %arg6[%c0_22, %c0_23] : memref<16x2xf32, #tpu.memory_space<vmem>>, vector<16x2xf32>
    %cst_24 = arith.constant dense<0.000000e+00> : vector<8x2xf32>
    %70 = tpu.matmul %68, %69, %cst_24 {dimension_numbers = #tpu.dot_dimension_numbers<[1], [0], [0], [1], [0, 0, 1, 1], [], []>} : vector<8x16xf32>, vector<16x2xf32>, vector<8x2xf32> -> vector<8x2xf32>
    %c0_25 = arith.constant 0 : index
    %c0_26 = arith.constant 0 : index
    %71 = vector.load %arg7[%c0_25, %c0_26] : memref<1x2xf32, #tpu.memory_space<vmem>>, vector<1x2xf32>
    %72 = vector.broadcast %71 : vector<1x2xf32> to vector<8x2xf32>
    %73 = arith.addf %70, %72 : vector<8x2xf32>
    %c0_27 = arith.constant 0 : index
    %c0_28 = arith.constant 0 : index
    %74 = vector.load %arg8[%c0_27, %c0_28] : memref<8x2xf32, #tpu.memory_space<vmem>>, vector<8x2xf32>
    tpu.vector_store %arg8[%c0_27, %c0_28], %73 {strides = array<i32>} : memref<8x2xf32, #tpu.memory_space<vmem>>, vector<8x2xf32>,
    return
  }
  func.func @transform_0(%arg0: i32) -> (i32, i32) {
    %c0_i32 = arith.constant 0 : i32
    %c0_i32_0 = arith.constant 0 : i32
    return %arg0, %c0_i32 : i32, i32
  }
  func.func @transform_1(%arg0: i32) -> (i32, i32) {
    %c0_i32 = arith.constant 0 : i32
    %c0_i32_0 = arith.constant 0 : i32
    %c0_i32_1 = arith.constant 0 : i32
    return %c0_i32, %c0_i32_0 : i32, i32
  }
  func.func @transform_2(%arg0: i32) -> (i32, i32) {
    %c0_i32 = arith.constant 0 : i32
    %c0_i32_0 = arith.constant 0 : i32
    %c0_i32_1 = arith.constant 0 : i32
    return %c0_i32, %c0_i32_0 : i32, i32
  }
  func.func @transform_3(%arg0: i32) -> (i32, i32) {
    %c0_i32 = arith.constant 0 : i32
    %c0_i32_0 = arith.constant 0 : i32
    %c0_i32_1 = arith.constant 0 : i32
    return %c0_i32, %c0_i32_0 : i32, i32
  }
  func.func @transform_4(%arg0: i32) -> (i32, i32) {
    %c0_i32 = arith.constant 0 : i32
    %c0_i32_0 = arith.constant 0 : i32
    %c0_i32_1 = arith.constant 0 : i32
    return %c0_i32, %c0_i32_0 : i32, i32
  }
  func.func @transform_5(%arg0: i32) -> (i32, i32) {
    %c0_i32 = arith.constant 0 : i32
    %c0_i32_0 = arith.constant 0 : i32
    %c0_i32_1 = arith.constant 0 : i32
    return %c0_i32, %c0_i32_0 : i32, i32
  }
  func.func @transform_6(%arg0: i32) -> (i32, i32) {
    %c0_i32 = arith.constant 0 : i32
    %c0_i32_0 = arith.constant 0 : i32
    %c0_i32_1 = arith.constant 0 : i32
    return %c0_i32, %c0_i32_0 : i32, i32
  }
  func.func @transform_7(%arg0: i32) -> (i32, i32) {
    %c0_i32 = arith.constant 0 : i32
    %c0_i32_0 = arith.constant 0 : i32
    return %arg0, %c0_i32 : i32, i32
  }
}

</mosaic_0001>

<llo_original>
// kernel: tpu_custom_call.1
$region0: #{tpu_custom_call.1}
  #allocation0 [shape = 'u32[]', space=smem, size = 0x4, offset = 0x4, fixed_abs, tag = 'smem constant byte address 0x4 - core index']
  #allocation1 [shape = 'u32[144,128]{1,0:T(1,128)}', space=vmem, size = 0x12000, scoped, tag = 'internal scratch']
  %s0 = inlined_call_operand.vmem [shape: f32[8,512], index: 0, kind: input, shape index: {}]
  %s1 = inlined_call_operand.vmem [shape: f32[512,4], index: 1, kind: input, shape index: {}]
  %s2 = inlined_call_operand.vmem [shape: f32[1,4], index: 2, kind: input, shape index: {}]
  %s3 = inlined_call_operand.vmem [shape: f32[4,16], index: 3, kind: input, shape index: {}]
  %s4 = inlined_call_operand.vmem [shape: f32[16,16], index: 4, kind: input, shape index: {}]
  %s5 = inlined_call_operand.vmem [shape: f32[16,2], index: 5, kind: input, shape index: {}]
  %s6 = inlined_call_operand.vmem [shape: f32[1,2], index: 6, kind: input, shape index: {}]
  %s7 = inlined_call_operand.vmem [shape: f32[8,2], index: 7, kind: output, shape index: {}]
  %s8 = sld [smem:[#allocation0]]
  $region38: #{tpu_custom_call.1} parent=0
    _
  %s10 = ssub.s32 1, %s8
  %s11 = scalar_select 0, %s10, %s8
  // Predicated region
  $region2: #{tpu_custom_call.1} parent=0 // pred_check
    _
  $region3: #{tpu_custom_call.1} parent=0 // pred_check_branch
    %13 = sbr.rel (0) target = $region5
  $region4: #{tpu_custom_call.1} parent=0 // pred_region
    _
  $region5: #{tpu_custom_call.1} parent=0 // pred_fallthru
    _
  // Predicated region
  $region6: #{tpu_custom_call.1} parent=0 // pred_check
    _
  $region7: #{tpu_custom_call.1} parent=0 // pred_check_branch
    %15 = sbr.rel (0) target = $region9
  $region8: #{tpu_custom_call.1} parent=0 // pred_region
    _
  $region9: #{tpu_custom_call.1} parent=0 // pred_fallthru
    _
  // Predicated region
  $region10: #{tpu_custom_call.1} parent=0 // pred_check
    _
  $region11: #{tpu_custom_call.1} parent=0 // pred_check_branch
    %17 = sbr.rel (0) target = $region13
  $region12: #{tpu_custom_call.1} parent=0 // pred_region
    _
  $region13: #{tpu_custom_call.1} parent=0 // pred_fallthru
    _
  // Predicated region
  $region14: #{tpu_custom_call.1} parent=0 // pred_check
    _
  $region15: #{tpu_custom_call.1} parent=0 // pred_check_branch
    %19 = sbr.rel (0) target = $region17
  $region16: #{tpu_custom_call.1} parent=0 // pred_region
    _
  $region17: #{tpu_custom_call.1} parent=0 // pred_fallthru
    _
  // Predicated region
  $region18: #{tpu_custom_call.1} parent=0 // pred_check
    _
  $region19: #{tpu_custom_call.1} parent=0 // pred_check_branch
    %21 = sbr.rel (0) target = $region21
  $region20: #{tpu_custom_call.1} parent=0 // pred_region
    _
  $region21: #{tpu_custom_call.1} parent=0 // pred_fallthru
    _
  // Predicated region
  $region22: #{tpu_custom_call.1} parent=0 // pred_check
    _
  $region23: #{tpu_custom_call.1} parent=0 // pred_check_branch
    %23 = sbr.rel (0) target = $region25
  $region24: #{tpu_custom_call.1} parent=0 // pred_region
    _
  $region25: #{tpu_custom_call.1} parent=0 // pred_fallthru
    _
  // Predicated region
  $region26: #{tpu_custom_call.1} parent=0 // pred_check
    _
  $region27: #{tpu_custom_call.1} parent=0 // pred_check_branch
    %25 = sbr.rel (0) target = $region29
  $region28: #{tpu_custom_call.1} parent=0 // pred_region
    _
  $region29: #{tpu_custom_call.1} parent=0 // pred_fallthru
    _
  %v26 = vld [vmem:[%s0] sm:$0xff]
  %v27 = vld [vmem:[%s0 + $0x8] sm:$0xff]
  %v28 = vld [vmem:[%s0 + $0x10] sm:$0xff]
  %v29 = vld [vmem:[%s0 + $0x18] sm:$0xff]
  %v30 = vld [vmem:[%s1] sm:$0xff]
  %v31 = vld [vmem:[%s1 + $0x8] sm:$0xff]
  %v32 = vld [vmem:[%s1 + $0x10] sm:$0xff]
  %v33 = vld [vmem:[%s1 + $0x18] sm:$0xff]
  %v34 = vld [vmem:[%s1 + $0x20] sm:$0xff]
  %v35 = vld [vmem:[%s1 + $0x28] sm:$0xff]
  %v36 = vld [vmem:[%s1 + $0x30] sm:$0xff]
  %v37 = vld [vmem:[%s1 + $0x38] sm:$0xff]
  %v38 = vld [vmem:[%s1 + $0x40] sm:$0xff]
  %v39 = vld [vmem:[%s1 + $0x48] sm:$0xff]
  %v40 = vld [vmem:[%s1 + $0x50] sm:$0xff]
  %v41 = vld [vmem:[%s1 + $0x58] sm:$0xff]
  %v42 = vld [vmem:[%s1 + $0x60] sm:$0xff]
  %v43 = vld [vmem:[%s1 + $0x68] sm:$0xff]
  %v44 = vld [vmem:[%s1 + $0x70] sm:$0xff]
  %v45 = vld [vmem:[%s1 + $0x78] sm:$0xff]
  %v46 = vld [vmem:[%s1 + $0x80] sm:$0xff]
  %v47 = vld [vmem:[%s1 + $0x88] sm:$0xff]
  %v48 = vld [vmem:[%s1 + $0x90] sm:$0xff]
  %v49 = vld [vmem:[%s1 + $0x98] sm:$0xff]
  %v50 = vld [vmem:[%s1 + $0xa0] sm:$0xff]
  %v51 = vld [vmem:[%s1 + $0xa8] sm:$0xff]
  %v52 = vld [vmem:[%s1 + $0xb0] sm:$0xff]
  %v53 = vld [vmem:[%s1 + $0xb8] sm:$0xff]
  %v54 = vld [vmem:[%s1 + $0xc0] sm:$0xff]
  %v55 = vld [vmem:[%s1 + $0xc8] sm:$0xff]
  %v56 = vld [vmem:[%s1 + $0xd0] sm:$0xff]
  %v57 = vld [vmem:[%s1 + $0xd8] sm:$0xff]
  %v58 = vld [vmem:[%s1 + $0xe0] sm:$0xff]
  %v59 = vld [vmem:[%s1 + $0xe8] sm:$0xff]
  %v60 = vld [vmem:[%s1 + $0xf0] sm:$0xff]
  %v61 = vld [vmem:[%s1 + $0xf8] sm:$0xff]
  %v62 = vld [vmem:[%s1 + $0x100] sm:$0xff]
  %v63 = vld [vmem:[%s1 + $0x108] sm:$0xff]
  %v64 = vld [vmem:[%s1 + $0x110] sm:$0xff]
  %v65 = vld [vmem:[%s1 + $0x118] sm:$0xff]
  %v66 = vld [vmem:[%s1 + $0x120] sm:$0xff]
  %v67 = vld [vmem:[%s1 + $0x128] sm:$0xff]
  %v68 = vld [vmem:[%s1 + $0x130] sm:$0xff]
  %v69 = vld [vmem:[%s1 + $0x138] sm:$0xff]
  %v70 = vld [vmem:[%s1 + $0x140] sm:$0xff]
  %v71 = vld [vmem:[%s1 + $0x148] sm:$0xff]
  %v72 = vld [vmem:[%s1 + $0x150] sm:$0xff]
  %v73 = vld [vmem:[%s1 + $0x158] sm:$0xff]
  %v74 = vld [vmem:[%s1 + $0x160] sm:$0xff]
  %v75 = vld [vmem:[%s1 + $0x168] sm:$0xff]
  %v76 = vld [vmem:[%s1 + $0x170] sm:$0xff]
  %v77 = vld [vmem:[%s1 + $0x178] sm:$0xff]
  %v78 = vld [vmem:[%s1 + $0x180] sm:$0xff]
  %v79 = vld [vmem:[%s1 + $0x188] sm:$0xff]
  %v80 = vld [vmem:[%s1 + $0x190] sm:$0xff]
  %v81 = vld [vmem:[%s1 + $0x198] sm:$0xff]
  %v82 = vld [vmem:[%s1 + $0x1a0] sm:$0xff]
  %v83 = vld [vmem:[%s1 + $0x1a8] sm:$0xff]
  %v84 = vld [vmem:[%s1 + $0x1b0] sm:$0xff]
  %v85 = vld [vmem:[%s1 + $0x1b8] sm:$0xff]
  %v86 = vld [vmem:[%s1 + $0x1c0] sm:$0xff]
  %v87 = vld [vmem:[%s1 + $0x1c8] sm:$0xff]
  %v88 = vld [vmem:[%s1 + $0x1d0] sm:$0xff]
  %v89 = vld [vmem:[%s1 + $0x1d8] sm:$0xff]
  %v90 = vld [vmem:[%s1 + $0x1e0] sm:$0xff]
  %v91 = vld [vmem:[%s1 + $0x1e8] sm:$0xff]
  %v92 = vld [vmem:[%s1 + $0x1f0] sm:$0xff]
  %v93 = vld [vmem:[%s1 + $0x1f8] sm:$0xff]
  %v94 = vld [vmem:[%s2] sm:$0x1]
  %v96 = vlaneseq
  %v97 = vshrl.u32 %v96, 7
  %v98 = vsub.s32 0, %v97
  %v99 = vrot.slane %v94, %v98
  %101 = vmatprep.subr.mxu0 0.0
  %102 = vmatpush1.msra.mxu0 %v45
  %103 = vmatprep.subr.mxu0 0.0
  %104 = vmatpush1.msra.mxu0 %v44
  %105 = vmatprep.subr.mxu0 0.0
  %106 = vmatpush1.msra.mxu0 %v43
  %107 = vmatprep.subr.mxu0 0.0
  %108 = vmatpush1.msra.mxu0 %v42
  %109 = vmatprep.subr.mxu0 0.0
  %110 = vmatpush1.msra.mxu0 %v41
  %111 = vmatprep.subr.mxu0 0.0
  %112 = vmatpush1.msra.mxu0 %v40
  %113 = vmatprep.subr.mxu0 0.0
  %114 = vmatpush1.msra.mxu0 %v39
  %115 = vmatprep.subr.mxu0 0.0
  %116 = vmatpush1.msra.mxu0 %v38
  %117 = vmatprep.subr.mxu0 0.0
  %118 = vmatpush1.msra.mxu0 %v37
  %119 = vmatprep.subr.mxu0 0.0
  %120 = vmatpush1.msra.mxu0 %v36
  %121 = vmatprep.subr.mxu0 0.0
  %122 = vmatpush1.msra.mxu0 %v35
  %123 = vmatprep.subr.mxu0 0.0
  %124 = vmatpush1.msra.mxu0 %v34
  %125 = vmatprep.subr.mxu0 0.0
  %126 = vmatpush1.msra.mxu0 %v33
  %127 = vmatprep.subr.mxu0 0.0
  %128 = vmatpush1.msra.mxu0 %v32
  %129 = vmatprep.subr.mxu0 0.0
  %130 = vmatpush1.msra.mxu0 %v31
  %131 = vmatprep.subr.mxu0 0.0
  %132 = vmatpush1.msra.mxu0 %v30
  %133 = vmatprep.subr.mxu0 0.0
  %134 = vmatpush2.msra.mxu0 %v61
  %135 = vmatprep.subr.mxu0 0.0
  %136 = vmatpush2.msra.mxu0 %v60
  %137 = vmatprep.subr.mxu0 0.0
  %138 = vmatpush2.msra.mxu0 %v59
  %139 = vmatprep.subr.mxu0 0.0
  %140 = vmatpush2.msra.mxu0 %v58
  %141 = vmatprep.subr.mxu0 0.0
  %142 = vmatpush2.msra.mxu0 %v57
  %143 = vmatprep.subr.mxu0 0.0
  %144 = vmatpush2.msra.mxu0 %v56
  %145 = vmatprep.subr.mxu0 0.0
  %146 = vmatpush2.msra.mxu0 %v55
  %147 = vmatprep.subr.mxu0 0.0
  %148 = vmatpush2.msra.mxu0 %v54
  %149 = vmatprep.subr.mxu0 0.0
  %150 = vmatpush2.msra.mxu0 %v53
  %151 = vmatprep.subr.mxu0 0.0
  %152 = vmatpush2.msra.mxu0 %v52
  %153 = vmatprep.subr.mxu0 0.0
  %154 = vmatpush2.msra.mxu0 %v51
  %155 = vmatprep.subr.mxu0 0.0
  %156 = vmatpush2.msra.mxu0 %v50
  %157 = vmatprep.subr.mxu0 0.0
  %158 = vmatpush2.msra.mxu0 %v49
  %159 = vmatprep.subr.mxu0 0.0
  %160 = vmatpush2.msra.mxu0 %v48
  %161 = vmatprep.subr.mxu0 0.0
  %162 = vmatpush2.msra.mxu0 %v47
  %163 = vmatprep.subr.mxu0 0.0
  %164 = vmatpush2.msra.mxu0 %v46
  %165 = vmatprep.mubr.f32.mxu0 %v27
  %166 = vmatmul.mubr.f32.gmra.mxu0 %v26
  %v167 = vpop.f32.mrf.mxu0
  %v168 = vadd.f32 %v99, %v167
  %v169 = vpop.f32.mrf.mxu0
  %170 = vdwg.mxu0
  %171 = vmatprep.subr.mxu0 0.0
  %172 = vmatpush1.msra.mxu0 %v77
  %173 = vmatprep.subr.mxu0 0.0
  %174 = vmatpush1.msra.mxu0 %v76
  %175 = vmatprep.subr.mxu0 0.0
  %176 = vmatpush1.msra.mxu0 %v75
  %177 = vmatprep.subr.mxu0 0.0
  %178 = vmatpush1.msra.mxu0 %v74
  %179 = vmatprep.subr.mxu0 0.0
  %180 = vmatpush1.msra.mxu0 %v73
  %181 = vmatprep.subr.mxu0 0.0
  %182 = vmatpush1.msra.mxu0 %v72
  %183 = vmatprep.subr.mxu0 0.0
  %184 = vmatpush1.msra.mxu0 %v71
  %185 = vmatprep.subr.mxu0 0.0
  %186 = vmatpush1.msra.mxu0 %v70
  %187 = vmatprep.subr.mxu0 0.0
  %188 = vmatpush1.msra.mxu0 %v69
  %189 = vmatprep.subr.mxu0 0.0
  %190 = vmatpush1.msra.mxu0 %v68
  %191 = vmatprep.subr.mxu0 0.0
  %192 = vmatpush1.msra.mxu0 %v67
  %193 = vmatprep.subr.mxu0 0.0
  %194 = vmatpush1.msra.mxu0 %v66
  %195 = vmatprep.subr.mxu0 0.0
  %196 = vmatpush1.msra.mxu0 %v65
  %197 = vmatprep.subr.mxu0 0.0
  %198 = vmatpush1.msra.mxu0 %v64
  %199 = vmatprep.subr.mxu0 0.0
  %200 = vmatpush1.msra.mxu0 %v63
  %201 = vmatprep.subr.mxu0 0.0
  %202 = vmatpush1.msra.mxu0 %v62
  %203 = vmatprep.subr.mxu0 0.0
  %204 = vmatpush2.msra.mxu0 %v93
  %205 = vmatprep.subr.mxu0 0.0
  %206 = vmatpush2.msra.mxu0 %v92
  %207 = vmatprep.subr.mxu0 0.0
  %208 = vmatpush2.msra.mxu0 %v91
  %209 = vmatprep.subr.mxu0 0.0
  %210 = vmatpush2.msra.mxu0 %v90
  %211 = vmatprep.subr.mxu0 0.0
  %212 = vmatpush2.msra.mxu0 %v89
  %213 = vmatprep.subr.mxu0 0.0
  %214 = vmatpush2.msra.mxu0 %v88
  %215 = vmatprep.subr.mxu0 0.0
  %216 = vmatpush2.msra.mxu0 %v87
  %217 = vmatprep.subr.mxu0 0.0
  %218 = vmatpush2.msra.mxu0 %v86
  %219 = vmatprep.subr.mxu0 0.0
  %220 = vmatpush2.msra.mxu0 %v85
  %221 = vmatprep.subr.mxu0 0.0
  %222 = vmatpush2.msra.mxu0 %v84
  %223 = vmatprep.subr.mxu0 0.0
  %224 = vmatpush2.msra.mxu0 %v83
  %225 = vmatprep.subr.mxu0 0.0
  %226 = vmatpush2.msra.mxu0 %v82
  %227 = vmatprep.subr.mxu0 0.0
  %228 = vmatpush2.msra.mxu0 %v81
  %229 = vmatprep.subr.mxu0 0.0
  %230 = vmatpush2.msra.mxu0 %v80
  %231 = vmatprep.subr.mxu0 0.0
  %232 = vmatpush2.msra.mxu0 %v79
  %233 = vmatprep.subr.mxu0 0.0
  %234 = vmatpush2.msra.mxu0 %v78
  %235 = vmatprep.mubr.f32.mxu0 %v29
  %236 = vmatmul.mubr.f32.gmra.mxu0 %v28
  %v237 = vpop.f32.mrf.mxu0
  %v238 = vadd.f32 %v168, %v237
  %v239 = vpop.f32.mrf.mxu0
  %240 = vdwg.mxu0
  %v241 = vtanh.pop %v238
  %v242 = vmul.f32 %v241, 0.7853982
  %v243 = vmul.f32 %v242, %v242
  %v244 = vmul.f32 %v243, 0.0013888889
  %v245 = vsub.f32 0.041666668, %v244
  %v246 = vmul.f32 %v243, %v245
  %v247 = vadd.f32 %v246, -0.5
  %v248 = vmul.f32 %v243, %v247
  %v249 = vadd.f32 %v248, 1.0
  %v250 = vmul.f32 %v243, 0.0001984127
  %v251 = vsub.f32 0.008333334, %v250
  %v252 = vmul.f32 %v243, %v251
  %v253 = vadd.f32 %v252, -0.16666667
  %v254 = vmul.f32 %v243, %v253
  %v255 = vadd.f32 %v254, 1.0
  %v256 = vmul.f32 %v242, %v255
  %v257 = vld [vmem:[%s3] sm:$0x1]
  %v258 = vlaneseq
  %v259 = vshrl.u32 %v258, 7
  %v260 = vsub.s32 0, %v259
  %v261 = vrot.slane %v257, %v260
  %263 = vset.pattern.permute.xlu0 0
  %264 = vperm.xlu0 %263, %v256
  %v265 = vpop.permute.xlu0 %264
  %v267 = vmul.f32 %v261, %v265
  %269 = vset.pattern.permute.xlu0 0
  %270 = vperm.xlu0 %269, %v249
  %v271 = vpop.permute.xlu0 %270
  %v273 = vadd.f32 %v271, %v267
  %v274 = vld [vmem:[%s3 + $0x1] sm:$0x1]
  %v275 = vlaneseq
  %v276 = vshrl.u32 %v275, 7
  %v277 = vsub.s32 0, %v276
  %v278 = vrot.slane %v274, %v277
  %279 = vset.pattern.permute.xlu0 1
  %280 = vperm.xlu0 %279, %v256
  %v281 = vpop.permute.xlu0 %280
  %v283 = vmul.f32 %v278, %v281
  %284 = vset.pattern.permute.xlu0 1
  %285 = vperm.xlu0 %284, %v249
  %v286 = vpop.permute.xlu0 %285
  %v288 = vadd.f32 %v286, %v283
  %v289 = vmul.f32 %v273, %v288
  %v290 = vld [vmem:[%s3 + $0x2] sm:$0x1]
  %v291 = vlaneseq
  %v292 = vshrl.u32 %v291, 7
  %v293 = vsub.s32 0, %v292
  %v294 = vrot.slane %v290, %v293
  %295 = vset.pattern.permute.xlu0 2
  %296 = vperm.xlu0 %295, %v256
  %v297 = vpop.permute.xlu0 %296
  %v299 = vmul.f32 %v294, %v297
  %300 = vset.pattern.permute.xlu0 2
  %301 = vperm.xlu0 %300, %v249
  %v302 = vpop.permute.xlu0 %301
  %v304 = vadd.f32 %v302, %v299
  %v305 = vmul.f32 %v289, %v304
  %v306 = vld [vmem:[%s3 + $0x3] sm:$0x1]
  %v307 = vlaneseq
  %v308 = vshrl.u32 %v307, 7
  %v309 = vsub.s32 0, %v308
  %v310 = vrot.slane %v306, %v309
  %311 = vset.pattern.permute.xlu0 3
  %312 = vperm.xlu0 %311, %v256
  %v313 = vpop.permute.xlu0 %312
  %v315 = vmul.f32 %v310, %v313
  %316 = vset.pattern.permute.xlu0 3
  %317 = vperm.xlu0 %316, %v249
  %v318 = vpop.permute.xlu0 %317
  %v320 = vadd.f32 %v318, %v315
  %v321 = vmul.f32 %v305, %v320
  %v322 = vld [vmem:[%s4] sm:$0xff]
  %v323 = vld [vmem:[%s4 + $0x8] sm:$0xff]
  %vm324 = vcmask 130048
  %v326 = vsel %vm324, %v321, 0
  %328 = vmatprep.subr.mxu0 0.0
  %329 = vmatpush1.msra.mxu0 0.0
  %330 = vmatprep.subr.mxu0 0.0
  %331 = vmatpush1.msra.mxu0 0.0
  %332 = vmatprep.subr.mxu0 0.0
  %333 = vmatpush1.msra.mxu0 0.0
  %334 = vmatprep.subr.mxu0 0.0
  %335 = vmatpush1.msra.mxu0 0.0
  %336 = vmatprep.subr.mxu0 0.0
  %337 = vmatpush1.msra.mxu0 0.0
  %338 = vmatprep.subr.mxu0 0.0
  %339 = vmatpush1.msra.mxu0 0.0
  %340 = vmatprep.subr.mxu0 0.0
  %341 = vmatpush1.msra.mxu0 0.0
  %342 = vmatprep.subr.mxu0 0.0
  %343 = vmatpush1.msra.mxu0 0.0
  %344 = vmatprep.subr.mxu0 0.0
  %345 = vmatpush1.msra.mxu0 0.0
  %346 = vmatprep.subr.mxu0 0.0
  %347 = vmatpush1.msra.mxu0 0.0
  %348 = vmatprep.subr.mxu0 0.0
  %349 = vmatpush1.msra.mxu0 0.0
  %350 = vmatprep.subr.mxu0 0.0
  %351 = vmatpush1.msra.mxu0 0.0
  %352 = vmatprep.subr.mxu0 0.0
  %353 = vmatpush1.msra.mxu0 0.0
  %354 = vmatprep.subr.mxu0 0.0
  %355 = vmatpush1.msra.mxu0 0.0
  %356 = vmatprep.subr.mxu0 0.0
  %357 = vmatpush1.msra.mxu0 %v323
  %358 = vmatprep.subr.mxu0 0.0
  %359 = vmatpush1.msra.mxu0 %v322
  %360 = vmatprep.subr.mxu0 0.0
  %361 = vmatpush2.msra.mxu0 0.0
  %362 = vmatprep.subr.mxu0 0.0
  %363 = vmatpush2.msra.mxu0 0.0
  %364 = vmatprep.subr.mxu0 0.0
  %365 = vmatpush2.msra.mxu0 0.0
  %366 = vmatprep.subr.mxu0 0.0
  %367 = vmatpush2.msra.mxu0 0.0
  %368 = vmatprep.subr.mxu0 0.0
  %369 = vmatpush2.msra.mxu0 0.0
  %370 = vmatprep.subr.mxu0 0.0
  %371 = vmatpush2.msra.mxu0 0.0
  %372 = vmatprep.subr.mxu0 0.0
  %373 = vmatpush2.msra.mxu0 0.0
  %374 = vmatprep.subr.mxu0 0.0
  %375 = vmatpush2.msra.mxu0 0.0
  %376 = vmatprep.subr.mxu0 0.0
  %377 = vmatpush2.msra.mxu0 0.0
  %378 = vmatprep.subr.mxu0 0.0
  %379 = vmatpush2.msra.mxu0 0.0
  %380 = vmatprep.subr.mxu0 0.0
  %381 = vmatpush2.msra.mxu0 0.0
  %382 = vmatprep.subr.mxu0 0.0
  %383 = vmatpush2.msra.mxu0 0.0
  %384 = vmatprep.subr.mxu0 0.0
  %385 = vmatpush2.msra.mxu0 0.0
  %386 = vmatprep.subr.mxu0 0.0
  %387 = vmatpush2.msra.mxu0 0.0
  %388 = vmatprep.subr.mxu0 0.0
  %389 = vmatpush2.msra.mxu0 0.0
  %390 = vmatprep.subr.mxu0 0.0
  %391 = vmatpush2.msra.mxu0 0.0
  %392 = vmatprep.mubr.f32.mxu0 0.0
  %393 = vmatmul.mubr.f32.gmra.mxu0 %v326
  %v394 = vpop.f32.mrf.mxu0
  %v395 = vadd.f32 0.0, %v394
  %v396 = vpop.f32.mrf.mxu0
  %397 = vdwg.mxu0
  %v398 = vmul.f32 %v395, %v395
  %v399 = vld [vmem:[%s5] sm:$0xff]
  %v400 = vld [vmem:[%s5 + $0x8] sm:$0xff]
  %v401 = vld [vmem:[%s6] sm:$0x1]
  %v403 = vlaneseq
  %v404 = vshrl.u32 %v403, 7
  %v405 = vsub.s32 0, %v404
  %v406 = vrot.slane %v401, %v405
  %v409 = vsel %vm324, %v398, 0
  %411 = vmatprep.subr.mxu0 0.0
  %412 = vmatpush1.msra.mxu0 0.0
  %413 = vmatprep.subr.mxu0 0.0
  %414 = vmatpush1.msra.mxu0 0.0
  %415 = vmatprep.subr.mxu0 0.0
  %416 = vmatpush1.msra.mxu0 0.0
  %417 = vmatprep.subr.mxu0 0.0
  %418 = vmatpush1.msra.mxu0 0.0
  %419 = vmatprep.subr.mxu0 0.0
  %420 = vmatpush1.msra.mxu0 0.0
  %421 = vmatprep.subr.mxu0 0.0
  %422 = vmatpush1.msra.mxu0 0.0
  %423 = vmatprep.subr.mxu0 0.0
  %424 = vmatpush1.msra.mxu0 0.0
  %425 = vmatprep.subr.mxu0 0.0
  %426 = vmatpush1.msra.mxu0 0.0
  %427 = vmatprep.subr.mxu0 0.0
  %428 = vmatpush1.msra.mxu0 0.0
  %429 = vmatprep.subr.mxu0 0.0
  %430 = vmatpush1.msra.mxu0 0.0
  %431 = vmatprep.subr.mxu0 0.0
  %432 = vmatpush1.msra.mxu0 0.0
  %433 = vmatprep.subr.mxu0 0.0
  %434 = vmatpush1.msra.mxu0 0.0
  %435 = vmatprep.subr.mxu0 0.0
  %436 = vmatpush1.msra.mxu0 0.0
  %437 = vmatprep.subr.mxu0 0.0
  %438 = vmatpush1.msra.mxu0 0.0
  %439 = vmatprep.subr.mxu0 0.0
  %440 = vmatpush1.msra.mxu0 %v400
  %441 = vmatprep.subr.mxu0 0.0
  %442 = vmatpush1.msra.mxu0 %v399
  %443 = vmatprep.subr.mxu0 0.0
  %444 = vmatpush2.msra.mxu0 0.0
  %445 = vmatprep.subr.mxu0 0.0
  %446 = vmatpush2.msra.mxu0 0.0
  %447 = vmatprep.subr.mxu0 0.0
  %448 = vmatpush2.msra.mxu0 0.0
  %449 = vmatprep.subr.mxu0 0.0
  %450 = vmatpush2.msra.mxu0 0.0
  %451 = vmatprep.subr.mxu0 0.0
  %452 = vmatpush2.msra.mxu0 0.0
  %453 = vmatprep.subr.mxu0 0.0
  %454 = vmatpush2.msra.mxu0 0.0
  %455 = vmatprep.subr.mxu0 0.0
  %456 = vmatpush2.msra.mxu0 0.0
  %457 = vmatprep.subr.mxu0 0.0
  %458 = vmatpush2.msra.mxu0 0.0
  %459 = vmatprep.subr.mxu0 0.0
  %460 = vmatpush2.msra.mxu0 0.0
  %461 = vmatprep.subr.mxu0 0.0
  %462 = vmatpush2.msra.mxu0 0.0
  %463 = vmatprep.subr.mxu0 0.0
  %464 = vmatpush2.msra.mxu0 0.0
  %465 = vmatprep.subr.mxu0 0.0
  %466 = vmatpush2.msra.mxu0 0.0
  %467 = vmatprep.subr.mxu0 0.0
  %468 = vmatpush2.msra.mxu0 0.0
  %469 = vmatprep.subr.mxu0 0.0
  %470 = vmatpush2.msra.mxu0 0.0
  %471 = vmatprep.subr.mxu0 0.0
  %472 = vmatpush2.msra.mxu0 0.0
  %473 = vmatprep.subr.mxu0 0.0
  %474 = vmatpush2.msra.mxu0 0.0
  %475 = vmatprep.mubr.f32.mxu0 0.0
  %476 = vmatmul.mubr.f32.gmra.mxu0 %v409
  %v477 = vpop.f32.mrf.mxu0
  %v478 = vadd.f32 %v406, %v477
  %v479 = vpop.f32.mrf.mxu0
  %480 = vdwg.mxu0
  %vm481 = vcmask 15360
  %482 = vst.msk [vmem:[%s7] sm:$0xff] %vm481, %v478
  // Predicated region
  $region30: #{tpu_custom_call.1} parent=0 // pred_check
    _
  $region31: #{tpu_custom_call.1} parent=0 // pred_check_branch
    %484 = sbr.rel (0) target = $region33
  $region32: #{tpu_custom_call.1} parent=0 // pred_region
    _
  $region33: #{tpu_custom_call.1} parent=0 // pred_fallthru
    _
  // Predicated region
  $region34: #{tpu_custom_call.1} parent=0 // pred_check
    _
  $region35: #{tpu_custom_call.1} parent=0 // pred_check_branch
    %486 = sbr.rel (0) target = $region37
  $region36: #{tpu_custom_call.1} parent=0 // pred_region
    _
  $region37: #{tpu_custom_call.1} parent=0 // pred_fallthru
    _

</llo_original>
